<compile_context>
chip_gen: v6e
topology: v6e:2x2x1
jax: 0.10.0
libtpu: 0.0.40
codegen_flags: <defaults>
</compile_context>

<pallas_src>
import math

import jax
import jax.numpy as jnp
from jax.experimental import pallas as pl
from jax.experimental.pallas import tpu as pltpu


# ---------------------------------------------------------------------------
# Kernel
# ---------------------------------------------------------------------------
def _add_pe_kernel(x_ref, pe_ref, o_ref):
    # x_ref: (bn, bt, D), pe_ref: (1, bt, D) -> broadcasts over the batch dim.
    o_ref[...] = x_ref[...] + pe_ref[...]


# ---------------------------------------------------------------------------
# PE table construction (host side, equivalent of register_buffer('pe', ...))
# ---------------------------------------------------------------------------
def make_positional_encoding(d_model, max_len=512, dtype=jnp.float32):
    position = jnp.arange(max_len, dtype=jnp.float32)[:, None]
    div_term = jnp.exp(
        jnp.arange(0, d_model, 2, dtype=jnp.float32)
        * (-math.log(10000.0) / d_model)
    )
    pe = jnp.zeros((max_len, d_model), jnp.float32)
    pe = pe.at[:, 0::2].set(jnp.sin(position * div_term))
    pe = pe.at[:, 1::2].set(jnp.cos(position * div_term))
    return pe[None].astype(dtype)  # (1, max_len, d_model)


# ---------------------------------------------------------------------------
# Forward wrapper (pallas_call plumbing)
# ---------------------------------------------------------------------------
def positional_encoding_forward(x, pe):
    """x: (N, T, D) ; pe: (1, max_len, D).  Returns x + pe[:, :T]."""
    N, T, D = x.shape
    assert pe.shape[0] == 1 and pe.shape[2] == D and pe.shape[1] >= T

    # pe[:, :x.size(1)] — slice outside the kernel (static shapes for Pallas).
    pe_slice = jax.lax.slice(pe, (0, 0, 0), (1, T, D))

    # Batch tiling: >=2 grid steps when possible (v7x has 2 TensorCores),
    # while each step handles a big (bn, T, D) slab to amortize the
    # ~0.35 us/step pipeline overhead on v5e/v6e.
    bn = N // 2 if (N >= 2 and N % 2 == 0) else 1
    nb = N // bn

    # Optional time tiling for very large T: keep per-block slab under ~8 MiB
    # so double-buffered x/out + the resident pe block fit the v7x 64 MiB
    # VMEM budget with plenty of headroom.
    itemsize = jnp.dtype(x.dtype).itemsize
    max_block_bytes = 8 * 1024 * 1024
    bt = T
    if bn * T * D * itemsize > max_block_bytes and T % 8 == 0:
        best = 8
        for bt_try in range(8, T + 1, 8):
            if T % bt_try == 0 and bn * bt_try * D * itemsize <= max_block_bytes:
                best = bt_try
        bt = best
    nt = T // bt

    grid = (nb, nt)
    return pl.pallas_call(
        _add_pe_kernel,
        out_shape=jax.ShapeDtypeStruct((N, T, D), x.dtype),
        grid=grid,
        in_specs=[
            pl.BlockSpec((bn, bt, D), lambda b, t: (b, t, 0)),  # x
            pl.BlockSpec((1, bt, D), lambda b, t: (0, t, 0)),   # pe (shared)
        ],
        out_specs=pl.BlockSpec((bn, bt, D), lambda b, t: (b, t, 0)),
        compiler_params=pltpu.CompilerParams(
            dimension_semantics=("parallel", "parallel"),
        ),
    )(x, pe_slice)


# ---------------------------------------------------------------------------
if __name__ == "__main__":
    # Small shapes consistent with the module's forward: (batch, seq, d_model).
    # D=128 keeps the last dim lane-dense (one full vreg lane width).
    N, T, D = 4, 64, 128
    max_len = 512

    key = jax.random.PRNGKey(0)
    x = jax.random.normal(key, (N, T, D), jnp.float32)

    pe = make_positional_encoding(D, max_len=max_len)

    out = positional_encoding_forward(x, pe)
    jax.block_until_ready(out)

    # Correctness check against the plain-JAX reference of the PyTorch forward.
    ref = x + pe[:, :T]
    assert out.shape == (N, T, D)
    assert bool(jnp.all(jnp.isfinite(out)))
    assert bool(jnp.allclose(out, ref, atol=1e-6, rtol=1e-6))

    print("KERNEL_OK")
</pallas_src>

<mosaic_0001>
module attributes {stable_mosaic.version = 11 : i64} {
  func.func @_add_pe_kernel(%arg0: i32, %arg1: i32, %arg2: memref<2x64x128xf32, #tpu.memory_space<vmem>>, %arg3: memref<1x64x128xf32, #tpu.memory_space<vmem>>, %arg4: memref<2x64x128xf32, #tpu.memory_space<vmem>>) attributes {dimension_semantics = [#tpu.dimension_semantics<parallel>, #tpu.dimension_semantics<parallel>], iteration_bounds = array<i64: 2, 1>, scalar_prefetch = 0 : i64, scratch_operands = 0 : i64, tpu.core_type = #tpu.core_type<tc>, window_params = [{transform_indices = @transform_0, window_bounds = array<i64: 2, 64, 128>}, {transform_indices = @transform_1, window_bounds = array<i64: 1, 64, 128>}, {transform_indices = @transform_2, window_bounds = array<i64: 2, 64, 128>}]} {
    %c0 = arith.constant 0 : index
    %c0_0 = arith.constant 0 : index
    %c0_1 = arith.constant 0 : index
    %0 = vector.load %arg2[%c0, %c0_0, %c0_1] : memref<2x64x128xf32, #tpu.memory_space<vmem>>, vector<2x64x128xf32>
    %c0_2 = arith.constant 0 : index
    %c0_3 = arith.constant 0 : index
    %c0_4 = arith.constant 0 : index
    %1 = vector.load %arg3[%c0_2, %c0_3, %c0_4] : memref<1x64x128xf32, #tpu.memory_space<vmem>>, vector<1x64x128xf32>
    %2 = vector.broadcast %1 : vector<1x64x128xf32> to vector<2x64x128xf32>
    %3 = arith.addf %0, %2 : vector<2x64x128xf32>
    %c0_5 = arith.constant 0 : index
    %c0_6 = arith.constant 0 : index
    %c0_7 = arith.constant 0 : index
    %4 = vector.load %arg4[%c0_5, %c0_6, %c0_7] : memref<2x64x128xf32, #tpu.memory_space<vmem>>, vector<2x64x128xf32>
    tpu.vector_store %arg4[%c0_5, %c0_6, %c0_7], %3 {strides = array<i32>} : memref<2x64x128xf32, #tpu.memory_space<vmem>>, vector<2x64x128xf32>,
    return
  }
  func.func @transform_0(%arg0: i32, %arg1: i32) -> (i32, i32, i32) {
    %c0_i32 = arith.constant 0 : i32
    %c0_i32_0 = arith.constant 0 : i32
    return %arg0, %arg1, %c0_i32 : i32, i32, i32
  }
  func.func @transform_1(%arg0: i32, %arg1: i32) -> (i32, i32, i32) {
    %c0_i32 = arith.constant 0 : i32
    %c0_i32_0 = arith.constant 0 : i32
    %c0_i32_1 = arith.constant 0 : i32
    return %c0_i32, %arg1, %c0_i32_0 : i32, i32, i32
  }
  func.func @transform_2(%arg0: i32, %arg1: i32) -> (i32, i32, i32) {
    %c0_i32 = arith.constant 0 : i32
    %c0_i32_0 = arith.constant 0 : i32
    return %arg0, %arg1, %c0_i32 : i32, i32, i32
  }
}

</mosaic_0001>

<llo_original>
// kernel: tpu_custom_call.1
$region0: #{tpu_custom_call.1}
  #allocation0 [shape = 'u32[]', space=smem, size = 0x4, offset = 0x4, fixed_abs, tag = 'smem constant byte address 0x4 - core index']
  #allocation1 [shape = 'u32[144,128]{1,0:T(1,128)}', space=vmem, size = 0x12000, scoped, tag = 'internal scratch']
  %s0 = inlined_call_operand.hbm [shape: f32[4,64,128], index: 0, kind: input, shape index: {}]
  %s1 = inlined_call_operand.hbm [shape: f32[1,64,128], index: 1, kind: input, shape index: {}]
  %s2 = inlined_call_operand.hbm [shape: f32[4,64,128], index: 2, kind: output, shape index: {}]
  %s3 = sld [smem:[#allocation0]]
  $region49: #{tpu_custom_call.1} parent=0
    _
  %s5 = ssub.s32 1, %s3
  %s6 = scalar_select 0, %s5, %s3
  $region1: #{tpu_custom_call.1} parent=0
    #allocation2 [shape = 'u8[131072]{0}', space=vmem, size = 0x20000, scoped, tag = 'input window, operand 0']
    #allocation3 [shape = 's32[2]{0}', space=sflag, size = 0x8, scoped, tag = 'scoped memory for tpu_custom_call.1']
    #allocation4 [shape = 's32[2]{0}', space=sflag, size = 0x8, scoped, tag = 'scoped memory for tpu_custom_call.1']
    #allocation5 [shape = 'u8[32768]{0}', space=vmem, size = 0x8000, scoped, tag = 'input window, operand 1, single buffered']
    #allocation6 [shape = 's32[1]{0}', space=sflag, size = 0x4, scoped, tag = 'scoped memory for tpu_custom_call.1']
    #allocation7 [shape = 'u8[131072]{0}', space=vmem, size = 0x20000, scoped, tag = 'output window, operand 0']
    %7 = vsyncpa [#allocation3], 0
    %s8 = scalar_lea.sflag [#allocation3], 1
    %9 = vsyncpa %s8, 0
    %10 = vsyncpa [#allocation6], 0
    %11 = vsyncpa [#allocation4], 0
    %s12 = scalar_lea.sflag [#allocation4], 1
    %13 = vsyncpa %s12, 0
    loop: start=0, step=1, limit=4
    $region2: #{tpu_custom_call.1} parent=1 // loop_pre_header
      _
    $region3: #{tpu_custom_call.1} parent=1 // loop_header
      %s15 = sphi 0, %s19
      %p16 = scmp.ge.s32.totalorder %s15, 4
      %s22 = sphi 0, %s34
      %s23 = sphi 0, %s30
      %s24 = sphi 0, %s22
      %s25 = sphi 0, %s23
      %s26 = sphi 0, %s24
      %s27 = sphi 0, %s25
      %s39 = sphi 0, %s41
      %s42 = sphi 0, %s39
      %s43 = sphi 0, %s42
      %s59 = sphi 0, %s43
      %s65 = sphi 0, %s67
      %s68 = sphi 0, %s65
      %s69 = sphi 0, %s68
      %s85 = sphi 0, %s69
      %s93 = sphi 0, %s95
      %s96 = sphi 0, %s93
      %s97 = sphi 0, %s96
      %s113 = sphi 0, %s97
    $region4: #{tpu_custom_call.1} parent=1 // loop_header_branch
      %18 = sbr.rel (%p16) target = $region8
    $region5: #{tpu_custom_call.1} parent=1 // loop_body
      %s20 = ssub.s32 %s15, 1
      %s21 = ssub.s32 %s15, 2
      %s28 = sadd.s32 1, %s23
      %p29 = scmp.ge.s32.totalorder %s28, 1
      %s30 = scalar_select %p29, 0, %s28
      %s31 = sadd.s32 1, %s22
      %s32 = scalar_select %p29, %s31, %s22
      %p33 = scmp.ge.s32.totalorder %s32, 2
      %s34 = scalar_select %p33, 0, %s32
      %s35 = ssub.s32 %s22, %s34
      %s36 = ssub.s32 %s23, %s30
      %s37 = sor.u32 %s35, %s36
      %p38 = scmp.eq.s32.totalorder %s37, 0
      %s40 = sadd.s32 %s39, 1
      %s41 = scalar_select %p38, %s39, %s40
      %p44 = pneg %p38
      %p45 = scmp.eq.s32.totalorder %s15, 1
      %p46 = por %p44, %p45
      %p47 = scmp.ne.s32.totalorder %s39, %s42
      %p48 = scmp.eq.s32.totalorder %s15, 0
      %p49 = por %p47, %p48
      %p50 = scmp.ne.s32.totalorder %s39, %s42
      %p51 = scmp.eq.s32.totalorder %s20, 1
      %p52 = por %p50, %p51
      %p53 = scmp.ne.s32.totalorder %s42, %s43
      %p54 = scmp.eq.s32.totalorder %s20, 0
      %p55 = por %p53, %p54
      %p56 = scmp.ne.s32.totalorder %s42, %s43
      %p57 = scmp.eq.s32.totalorder %s21, 1
      %p58 = por %p56, %p57
      %p60 = scmp.ne.s32.totalorder %s43, %s59
      %p61 = scmp.eq.s32.totalorder %s21, 0
      %p62 = por %p60, %p61
      %s63 = ssub.s32 %s23, %s30
      %p64 = scmp.eq.s32.totalorder %s63, 0
      %s66 = sadd.s32 %s65, 1
      %s67 = scalar_select %p64, %s65, %s66
      %p70 = pneg %p64
      %p71 = scmp.eq.s32.totalorder %s15, 1
      %p72 = por %p70, %p71
      %p73 = scmp.ne.s32.totalorder %s65, %s68
      %p74 = scmp.eq.s32.totalorder %s15, 0
      %p75 = por %p73, %p74
      %p76 = scmp.ne.s32.totalorder %s65, %s68
      %p77 = scmp.eq.s32.totalorder %s20, 1
      %p78 = por %p76, %p77
      %p79 = scmp.ne.s32.totalorder %s68, %s69
      %p80 = scmp.eq.s32.totalorder %s20, 0
      %p81 = por %p79, %p80
      %p82 = scmp.ne.s32.totalorder %s68, %s69
      %p83 = scmp.eq.s32.totalorder %s21, 1
      %p84 = por %p82, %p83
      %p86 = scmp.ne.s32.totalorder %s69, %s85
      %p87 = scmp.eq.s32.totalorder %s21, 0
      %p88 = por %p86, %p87
      %s89 = ssub.s32 %s22, %s34
      %s90 = ssub.s32 %s23, %s30
      %s91 = sor.u32 %s89, %s90
      %p92 = scmp.eq.s32.totalorder %s91, 0
      %s94 = sadd.s32 %s93, 1
      %s95 = scalar_select %p92, %s93, %s94
      %p98 = pneg %p92
      %p99 = scmp.eq.s32.totalorder %s15, 1
      %p100 = por %p98, %p99
      %p101 = scmp.ne.s32.totalorder %s93, %s96
      %p102 = scmp.eq.s32.totalorder %s15, 0
      %p103 = por %p101, %p102
      %p104 = scmp.ne.s32.totalorder %s93, %s96
      %p105 = scmp.eq.s32.totalorder %s20, 1
      %p106 = por %p104, %p105
      %p107 = scmp.ne.s32.totalorder %s96, %s97
      %p108 = scmp.eq.s32.totalorder %s20, 0
      %p109 = por %p107, %p108
      %p110 = scmp.ne.s32.totalorder %s96, %s97
      %p111 = scmp.eq.s32.totalorder %s21, 1
      %p112 = por %p110, %p111
      %p114 = scmp.ne.s32.totalorder %s97, %s113
      %p115 = scmp.eq.s32.totalorder %s21, 0
      %p116 = por %p114, %p115
      %p117 = scmp.le.s32.totalorder 1, %s15
      %p118 = scmp.lt.s32.totalorder %s15, 3
      %p119 = pnand %p117, %p118
      %p120 = pneg %p119
      // Predicated region
      $region9: #{tpu_custom_call.1} parent=5 // pred_check
        _
      $region10: #{tpu_custom_call.1} parent=5 // pred_check_branch
        %122 = sbr.rel (%p119) target = $region12
      $region11: #{tpu_custom_call.1} parent=5 // pred_region
        %s123 = ssub.s32 %s15, 1
        // Predicated region
        $region13: #{tpu_custom_call.1} parent=11 // pred_check
          %p124 = pneg %p81
        $region14: #{tpu_custom_call.1} parent=11 // pred_check_branch
          %126 = sbr.rel (%p124) target = $region16
        $region15: #{tpu_custom_call.1} parent=11 // pred_region
          %s127 = smul.u32 8, %s25
          %s129 = ssub.s32 1024, 1024
          %130 = vsyncadd [#allocation6], %s129
          %s131 = smul.addr %s127, 128
          %s132 = scalar_lea.hbm %s1, %s131
          %s133 = sshll.u32 [#allocation5], 4
          %s134 = int_to_ptr.vmem [resolvable:$true] %s133
          %139 = dma.hbm_to_vmem [thread:$0]  %s132, 1024, %s134, [#allocation6], 128, 128, 8
        $region16: #{tpu_custom_call.1} parent=11 // pred_fallthru
          _
      $region12: #{tpu_custom_call.1} parent=5 // pred_fallthru
        _
      %p140 = scmp.lt.s32.totalorder %s15, 2
      // Predicated region
      $region17: #{tpu_custom_call.1} parent=5 // pred_check
        %p141 = pneg %p140
      $region18: #{tpu_custom_call.1} parent=5 // pred_check_branch
        %143 = sbr.rel (%p141) target = $region20
      $region19: #{tpu_custom_call.1} parent=5 // pred_region
        // Predicated region
        $region21: #{tpu_custom_call.1} parent=19 // pred_check
          %p144 = pneg %p49
        $region22: #{tpu_custom_call.1} parent=19 // pred_check_branch
          %146 = sbr.rel (%p144) target = $region24
        $region23: #{tpu_custom_call.1} parent=19 // pred_region
          %s147 = sand.u32 %s39, 1
          %s148 = scalar_lea.sflag [#allocation3], %s147
          %s149 = sand.u32 %s39, 1
          %s150 = smul.addr %s149, 128
          %s151 = scalar_lea.vmem [#allocation2], %s150
          %s152 = smul.u32 2, %s22
          %s153 = smul.u32 8, %s23
          %s155 = ssub.s32 2048, 2048
          %156 = vsyncadd %s148, %s155
          %s157 = smul.addr %s152, 8
          %s158 = sadd.s32 %s153, %s157
          %s159 = smul.addr %s158, 128
          %s160 = scalar_lea.hbm %s0, %s159
          %s161 = sshll.u32 %s151, 4
          %s162 = int_to_ptr.vmem [resolvable:$true] %s161
          %167 = dma.hbm_to_vmem [thread:$0]  %s160, 2048, %s162, %s148, 128, 128, 8
        $region24: #{tpu_custom_call.1} parent=19 // pred_fallthru
          _
      $region20: #{tpu_custom_call.1} parent=5 // pred_fallthru
        _
      %p168 = scmp.le.s32.totalorder 1, %s15
      %p169 = scmp.lt.s32.totalorder %s15, 3
      %p170 = pnand %p168, %p169
      %p171 = pneg %p170
      // Predicated region
      $region25: #{tpu_custom_call.1} parent=5 // pred_check
        _
      $region26: #{tpu_custom_call.1} parent=5 // pred_check_branch
        %173 = sbr.rel (%p170) target = $region28
      $region27: #{tpu_custom_call.1} parent=5 // pred_region
        %s174 = ssub.s32 %s15, 1
        %s175 = sand.u32 %s42, 1
        %s176 = scalar_lea.sflag [#allocation3], %s175
        %s177 = sand.u32 %s42, 1
        %s178 = smul.addr %s177, 128
        %s179 = scalar_lea.vmem [#allocation2], %s178
        // Predicated region
        $region29: #{tpu_custom_call.1} parent=27 // pred_check
          %p180 = pneg %p55
        $region30: #{tpu_custom_call.1} parent=27 // pred_check_branch
          %182 = sbr.rel (%p180) target = $region32
        $region31: #{tpu_custom_call.1} parent=27 // pred_region
          %183 = dma.done %s176, 2048
        $region32: #{tpu_custom_call.1} parent=27 // pred_fallthru
          _
        // Predicated region
        $region33: #{tpu_custom_call.1} parent=27 // pred_check
          %p184 = pneg %p81
        $region34: #{tpu_custom_call.1} parent=27 // pred_check_branch
          %186 = sbr.rel (%p184) target = $region36
        $region35: #{tpu_custom_call.1} parent=27 // pred_region
          %187 = dma.done [#allocation6], 1024
        $region36: #{tpu_custom_call.1} parent=27 // pred_fallthru
          _
        %s188 = sand.u32 %s42, 1
        %s189 = scalar_lea.sflag [#allocation3], %s188
        %s190 = sand.u32 %s42, 1
        %s191 = smul.addr %s190, 128
        %s192 = scalar_lea.vmem [#allocation2], %s191
        %p193 = pneg %p55
        %p194 = pneg %p52
        %p195 = pneg %p81
        %p196 = pneg %p78
        %p197 = pneg %p109
        %p198 = pneg %p106
        %s199 = sand.u32 %s96, 1
        %s200 = scalar_lea.sflag [#allocation4], %s199
        %s201 = sand.u32 %s96, 1
        %s202 = smul.addr %s201, 128
        %s203 = scalar_lea.vmem [#allocation7], %s202
        %s204 = smul.u32 2, %s24
        %s205 = smul.u32 8, %s25
        %s206 = smul.u32 8, %s25
        %s207 = smul.u32 2, %s24
        %s208 = smul.u32 8, %s25
        %v209 = vld [vmem:[%s179] sm:$0xff]
        %v210 = vld [vmem:[%s179 + $0x8] sm:$0xff]
        %v211 = vld [vmem:[%s179 + $0x10] sm:$0xff]
        %v212 = vld [vmem:[%s179 + $0x18] sm:$0xff]
        %v213 = vld [vmem:[%s179 + $0x20] sm:$0xff]
        %v214 = vld [vmem:[%s179 + $0x28] sm:$0xff]
        %v215 = vld [vmem:[%s179 + $0x30] sm:$0xff]
        %v216 = vld [vmem:[%s179 + $0x38] sm:$0xff]
        %v217 = vld [vmem:[%s179 + $0x40] sm:$0xff]
        %v218 = vld [vmem:[%s179 + $0x48] sm:$0xff]
        %v219 = vld [vmem:[%s179 + $0x50] sm:$0xff]
        %v220 = vld [vmem:[%s179 + $0x58] sm:$0xff]
        %v221 = vld [vmem:[%s179 + $0x60] sm:$0xff]
        %v222 = vld [vmem:[%s179 + $0x68] sm:$0xff]
        %v223 = vld [vmem:[%s179 + $0x70] sm:$0xff]
        %v224 = vld [vmem:[%s179 + $0x78] sm:$0xff]
        %v225 = vld [vmem:[#allocation5] sm:$0xff]
        %v226 = vld [vmem:[#allocation5 + $0x8] sm:$0xff]
        %v227 = vld [vmem:[#allocation5 + $0x10] sm:$0xff]
        %v228 = vld [vmem:[#allocation5 + $0x18] sm:$0xff]
        %v229 = vld [vmem:[#allocation5 + $0x20] sm:$0xff]
        %v230 = vld [vmem:[#allocation5 + $0x28] sm:$0xff]
        %v231 = vld [vmem:[#allocation5 + $0x30] sm:$0xff]
        %v232 = vld [vmem:[#allocation5 + $0x38] sm:$0xff]
        %v233 = vadd.f32 %v209, %v225
        %v234 = vadd.f32 %v210, %v226
        %v235 = vadd.f32 %v211, %v227
        %v236 = vadd.f32 %v212, %v228
        %v237 = vadd.f32 %v213, %v229
        %v238 = vadd.f32 %v214, %v230
        %v239 = vadd.f32 %v215, %v231
        %v240 = vadd.f32 %v216, %v232
        %v241 = vadd.f32 %v217, %v225
        %v242 = vadd.f32 %v218, %v226
        %v243 = vadd.f32 %v219, %v227
        %v244 = vadd.f32 %v220, %v228
        %v245 = vadd.f32 %v221, %v229
        %v246 = vadd.f32 %v222, %v230
        %v247 = vadd.f32 %v223, %v231
        %v248 = vadd.f32 %v224, %v232
        %249 = vst [vmem:[%s203] sm:$0xff] %v233
        %250 = vst [vmem:[%s203 + $0x8] sm:$0xff] %v234
        %251 = vst [vmem:[%s203 + $0x10] sm:$0xff] %v235
        %252 = vst [vmem:[%s203 + $0x18] sm:$0xff] %v236
        %253 = vst [vmem:[%s203 + $0x20] sm:$0xff] %v237
        %254 = vst [vmem:[%s203 + $0x28] sm:$0xff] %v238
        %255 = vst [vmem:[%s203 + $0x30] sm:$0xff] %v239
        %256 = vst [vmem:[%s203 + $0x38] sm:$0xff] %v240
        %257 = vst [vmem:[%s203 + $0x40] sm:$0xff] %v241
        %258 = vst [vmem:[%s203 + $0x48] sm:$0xff] %v242
        %259 = vst [vmem:[%s203 + $0x50] sm:$0xff] %v243
        %260 = vst [vmem:[%s203 + $0x58] sm:$0xff] %v244
        %261 = vst [vmem:[%s203 + $0x60] sm:$0xff] %v245
        %262 = vst [vmem:[%s203 + $0x68] sm:$0xff] %v246
        %263 = vst [vmem:[%s203 + $0x70] sm:$0xff] %v247
        %264 = vst [vmem:[%s203 + $0x78] sm:$0xff] %v248
        %s265 = sand.u32 %s96, 1
        %s266 = scalar_lea.sflag [#allocation4], %s265
        %s267 = sand.u32 %s96, 1
        %s268 = smul.addr %s267, 128
        %s269 = scalar_lea.vmem [#allocation7], %s268
        // Predicated region
        $region37: #{tpu_custom_call.1} parent=27 // pred_check
          %p270 = pneg %p106
        $region38: #{tpu_custom_call.1} parent=27 // pred_check_branch
          %272 = sbr.rel (%p270) target = $region40
        $region39: #{tpu_custom_call.1} parent=27 // pred_region
          %s273 = smul.u32 2, %s24
          %s274 = smul.u32 8, %s25
          %s276 = ssub.s32 2048, 2048
          %277 = vsyncadd %s266, %s276
          %s278 = smul.addr %s273, 8
          %s279 = sadd.s32 %s274, %s278
          %s280 = smul.addr %s279, 128
          %s281 = scalar_lea.hbm %s2, %s280
          %s282 = sshll.u32 %s269, 4
          %s283 = int_to_ptr.vmem [resolvable:$true] %s282
          %288 = dma.vmem_to_hbm [thread:$0]  %s283, 2048, %s281, %s266, 128, 128, 8
        $region40: #{tpu_custom_call.1} parent=27 // pred_fallthru
          _
      $region28: #{tpu_custom_call.1} parent=5 // pred_fallthru
        _
      %p289 = scmp.le.s32.totalorder 2, %s15
      // Predicated region
      $region41: #{tpu_custom_call.1} parent=5 // pred_check
        %p290 = pneg %p289
      $region42: #{tpu_custom_call.1} parent=5 // pred_check_branch
        %292 = sbr.rel (%p290) target = $region44
      $region43: #{tpu_custom_call.1} parent=5 // pred_region
        %s293 = ssub.s32 %s15, 2
        // Predicated region
        $region45: #{tpu_custom_call.1} parent=43 // pred_check
          %p294 = pneg %p112
        $region46: #{tpu_custom_call.1} parent=43 // pred_check_branch
          %296 = sbr.rel (%p294) target = $region48
        $region47: #{tpu_custom_call.1} parent=43 // pred_region
          %s297 = sand.u32 %s97, 1
          %s298 = scalar_lea.sflag [#allocation4], %s297
          %s299 = sand.u32 %s97, 1
          %s300 = smul.addr %s299, 128
          %s301 = scalar_lea.vmem [#allocation7], %s300
          %302 = dma.done %s298, 2048
        $region48: #{tpu_custom_call.1} parent=43 // pred_fallthru
          _
      $region44: #{tpu_custom_call.1} parent=5 // pred_fallthru
        _
    $region6: #{tpu_custom_call.1} parent=1 // loop_footer
      %s19 = sadd.s32 1, %s15
    $region7: #{tpu_custom_call.1} parent=1 // loop_footer_branch
      %14 = sbr.rel target = $region3
    $region8: #{tpu_custom_call.1} parent=1 // loop_exit
      _
    %303 = vsyncpa [#allocation3], 1
    %s304 = scalar_lea.sflag [#allocation3], 1
    %305 = vsyncpa %s304, 1
    %306 = vsyncpa [#allocation6], 1
    %307 = vsyncpa [#allocation4], 1
    %s308 = scalar_lea.sflag [#allocation4], 1
    %309 = vsyncpa %s308, 1

</llo_original>
